<compile_context>
chip_gen: v6e
topology: v6e:2x2x1
jax: 0.10.0
libtpu: 0.0.40
codegen_flags: <defaults>
</compile_context>

<pallas_src>
import math

import jax
import jax.numpy as jnp
from jax import lax
from jax.experimental import pallas as pl
from jax.experimental.pallas import tpu as pltpu


# Optional scoped-VMEM override.  The default tile sizes below fit every
# generation's default scoped limit (16 MiB v5e / 32 MiB v6e / 32-of-64 MiB
# v7x).  Raise this (e.g. 96<<20 on v6e, <=48<<20 on v7x) when sweeping larger
# tq / tm tiles.
VMEM_LIMIT_BYTES = None


def _compiler_params(dimension_semantics):
    return pltpu.CompilerParams(
        dimension_semantics=dimension_semantics,
        vmem_limit_bytes=VMEM_LIMIT_BYTES,
    )


def _sublane(dtype):
    """Sublane granule for a dtype (8 for 4-byte, 16 for 2-byte, 32 for 1-byte)."""
    return {4: 8, 2: 16, 1: 32}.get(jnp.dtype(dtype).itemsize, 8)


def _pick_tile(dim, target, granule):
    """Largest multiple of `granule` <= target that divides dim.

    Falls back to the full dimension (always a legal block) when the dim is
    small or has no granule-aligned divisor, so we never emit misaligned or
    pathologically tiny tiles.
    """
    if dim <= target:
        return dim
    t = min(target, dim)
    t -= t % granule
    while t >= granule:
        if dim % t == 0:
            return t
        t -= granule
    return dim


# ----------------------------------------------------------------------------
# Kernel 1: head-split linear projection.
#   x: (B, M, H_in), w_heads: (KH, H_in, D)  ->  y: (B, KH, M, D)
#   Grid (B, M/tm, KH); the head axis is innermost so the (tm, H_in) x tile is
#   DMA'd once per (b, m-tile) and reused for every head (and for all of
#   Q/K/V in the fused path).  Full-H_in contraction -> no accumulator needed.
# ----------------------------------------------------------------------------
def _head_proj_kernel(x_ref, w_ref, o_ref):
    x = x_ref[...].astype(w_ref.dtype)           # cast activations in-VMEM (bf16 path)
    o_ref[...] = jnp.dot(
        x, w_ref[...], preferred_element_type=jnp.float32
    ).astype(o_ref.dtype)


def head_projection(x, w_heads, *, tm=256):
    B, M, H_in = x.shape
    KH, _, D = w_heads.shape
    gran = max(_sublane(x.dtype), _sublane(w_heads.dtype))
    tm = _pick_tile(M, tm, gran)
    grid = (B, M // tm, KH)
    return pl.pallas_call(
        _head_proj_kernel,
        out_shape=jax.ShapeDtypeStruct((B, KH, M, D), w_heads.dtype),
        grid_spec=pltpu.PrefetchScalarGridSpec(
            num_scalar_prefetch=0,
            grid=grid,
            in_specs=[
                # x tile independent of h -> stays resident across the head loop.
                pl.BlockSpec((None, tm, H_in), lambda b, mi, h: (b, mi, 0)),
                pl.BlockSpec((None, H_in, D), lambda b, mi, h: (h, 0, 0)),
            ],
            out_specs=pl.BlockSpec(
                (None, None, tm, D), lambda b, mi, h: (b, h, mi, 0)
            ),
        ),
        compiler_params=_compiler_params(("parallel", "parallel", "parallel")),
    )(x, w_heads)


# ----------------------------------------------------------------------------
# Kernel 2: per-(batch, head) flash attention with online softmax.
#   q/k/v: (B, KH, M, D) (KH may be 3K for the fused-QKV array; head offsets
#   select the right third).  Grid (B, K, M/tq, M/tkv), kv axis last.
#   1/sqrt(D) is already folded into w_q, so no in-loop scaling.
# ----------------------------------------------------------------------------
def _flash_attn_kernel(q_ref, k_ref, v_ref, o_ref, m_sc, l_sc, acc_sc):
    kv = pl.program_id(3)

    @pl.when(kv == 0)
    def _():
        m_sc[...] = jnp.full_like(m_sc, -jnp.inf)
        l_sc[...] = jnp.zeros_like(l_sc)
        acc_sc[...] = jnp.zeros_like(acc_sc)

    # Transpose-free Q K^T: contract the last dims of both operands.
    s = lax.dot_general(
        q_ref[...], k_ref[...],
        dimension_numbers=(((1,), (1,)), ((), ())),
        preferred_element_type=jnp.float32,
    )                                                   # (tq, tkv), f32

    m_prev = m_sc[...]
    m_new = jnp.maximum(m_prev, s.max(axis=-1, keepdims=True))
    alpha = jnp.exp(m_prev - m_new)
    p = jnp.exp(s - m_new)
    l_sc[...] = alpha * l_sc[...] + p.sum(axis=-1, keepdims=True)
    acc_sc[...] = alpha * acc_sc[...] + jnp.dot(
        p.astype(v_ref.dtype), v_ref[...], preferred_element_type=jnp.float32
    )
    m_sc[...] = m_new

    # NOTE: nn.Dropout on p would go here; identity at inference.
    @pl.when(kv == pl.num_programs(3) - 1)
    def _():
        # Exact division (not approx reciprocal) so the f32 path can be
        # validated at tight tolerance.
        o_ref[...] = (acc_sc[...] / l_sc[...]).astype(o_ref.dtype)


def flash_attention(q_arr, k_arr, v_arr, nb_heads, *,
                    q_head0=0, k_head0=0, v_head0=0, tq=512, tkv=256):
    B, _, M, D = q_arr.shape
    gran = _sublane(q_arr.dtype)
    tq = _pick_tile(M, tq, gran)
    tkv = _pick_tile(M, tkv, gran)
    grid = (B, nb_heads, M // tq, M // tkv)
    return pl.pallas_call(
        _flash_attn_kernel,
        out_shape=jax.ShapeDtypeStruct((B, nb_heads, M, D), q_arr.dtype),
        grid_spec=pltpu.PrefetchScalarGridSpec(
            num_scalar_prefetch=0,
            grid=grid,
            in_specs=[
                pl.BlockSpec((None, None, tq, D),
                             lambda b, h, qi, ki: (b, h + q_head0, qi, 0)),
                pl.BlockSpec((None, None, tkv, D),
                             lambda b, h, qi, ki: (b, h + k_head0, ki, 0)),
                pl.BlockSpec((None, None, tkv, D),
                             lambda b, h, qi, ki: (b, h + v_head0, ki, 0)),
            ],
            out_specs=pl.BlockSpec((None, None, tq, D),
                                   lambda b, h, qi, ki: (b, h, qi, 0)),
            scratch_shapes=[
                pltpu.VMEM((tq, 1), jnp.float32),   # running max
                pltpu.VMEM((tq, 1), jnp.float32),   # running denominator
                pltpu.VMEM((tq, D), jnp.float32),   # output accumulator
            ],
        ),
        compiler_params=_compiler_params(
            ("parallel", "parallel", "parallel", "arbitrary")),
    )(q_arr, k_arr, v_arr)


# ----------------------------------------------------------------------------
# Kernel 3: output projection with fused head-merge.
#   attn: (B, K, M, D), w_o_t: (K, D, H_out)  ->  y: (B, M, H_out)
#   Grid (B, M/tm, H_out/tn, K); the head axis is the reduction axis, so the
#   head-merge transpose never materializes in HBM.
# ----------------------------------------------------------------------------
def _out_proj_kernel(a_ref, w_ref, o_ref, acc_ref):
    @pl.when(pl.program_id(3) == 0)
    def _():
        acc_ref[...] = jnp.zeros_like(acc_ref)

    acc_ref[...] += jnp.dot(
        a_ref[...], w_ref[...], preferred_element_type=jnp.float32
    )

    @pl.when(pl.program_id(3) == pl.num_programs(3) - 1)
    def _():
        o_ref[...] = acc_ref[...].astype(o_ref.dtype)


def out_projection(attn, w_o_t, *, out_dtype, tm=256, tn=256):
    B, K, M, D = attn.shape
    _, _, H_out = w_o_t.shape
    gran = max(_sublane(attn.dtype), _sublane(out_dtype))
    tm = _pick_tile(M, tm, gran)
    tn = _pick_tile(H_out, tn, 128)
    grid = (B, M // tm, H_out // tn, K)
    return pl.pallas_call(
        _out_proj_kernel,
        out_shape=jax.ShapeDtypeStruct((B, M, H_out), out_dtype),
        grid_spec=pltpu.PrefetchScalarGridSpec(
            num_scalar_prefetch=0,
            grid=grid,
            in_specs=[
                pl.BlockSpec((None, None, tm, D),
                             lambda b, mi, j, k: (b, k, mi, 0)),
                pl.BlockSpec((None, D, tn),
                             lambda b, mi, j, k: (k, 0, j)),
            ],
            out_specs=pl.BlockSpec((None, tm, tn),
                                   lambda b, mi, j, k: (b, mi, j)),
            scratch_shapes=[pltpu.VMEM((tm, tn), jnp.float32)],
        ),
        compiler_params=_compiler_params(
            ("parallel", "parallel", "parallel", "arbitrary")),
    )(attn, w_o_t)


# ----------------------------------------------------------------------------
# MultiHeadSeqAttention forward.
# ----------------------------------------------------------------------------
def prepare_params(params, nb_heads, compute_dtype):
    """One-time weight rearrangement (fold into module init in real use).

    Returns:
      w_qkv: (3*K, H_in, D) with 1/sqrt(D) folded into the Q third.
      w_o_t: (K, D, H_out).
    Both are cast to compute_dtype (bf16 in production) so the kernels stream
    half the weight bytes and feed the MXU at its native bf16 rate.
    """
    H_out, H_in = params["w_q"].shape
    D = H_out // nb_heads
    scale = 1.0 / math.sqrt(D)

    def heads(w):  # (K*D, H_in) torch layout -> (K, H_in, D)
        return jnp.transpose(w.reshape(nb_heads, D, H_in), (0, 2, 1))

    w_qkv = jnp.concatenate(
        [heads(params["w_q"] * scale), heads(params["w_k"]), heads(params["w_v"])],
        axis=0,
    ).astype(compute_dtype)
    w_o_t = (
        jnp.transpose(params["w_o"], (1, 0))
        .reshape(nb_heads, D, H_out)
        .astype(compute_dtype)
    )
    return w_qkv, w_o_t


def multi_head_seq_attention(params, query, key, value, nb_heads, *,
                             compute_dtype=jnp.bfloat16):
    B, M, H = query.shape
    out_dtype = query.dtype
    w_qkv, w_o_t = prepare_params(params, nb_heads, compute_dtype)

    if (query is key) and (key is value):
        # Self-attention: fused QKV projection — the input activation is read
        # from HBM once, and the attention pulls q/k/v out of the single
        # (B, 3K, M, D) result via head-offset index_maps (no slicing copies).
        qkv = head_projection(query, w_qkv)
        attn = flash_attention(qkv, qkv, qkv, nb_heads,
                               q_head0=0, k_head0=nb_heads, v_head0=2 * nb_heads)
    else:
        q = head_projection(query, w_qkv[:nb_heads])
        k = head_projection(key, w_qkv[nb_heads:2 * nb_heads])
        v = head_projection(value, w_qkv[2 * nb_heads:])
        attn = flash_attention(q, k, v, nb_heads)

    return out_projection(attn, w_o_t, out_dtype=out_dtype)


# Pure-JAX reference for correctness checks.
def reference(params, query, key, value, nb_heads):
    B, M, H = query.shape
    D = H // nb_heads
    q = query @ params["w_q"].T
    k = key @ params["w_k"].T
    v = value @ params["w_v"].T

    def hr(x):
        return jnp.transpose(x.reshape(B, M, nb_heads, D), (0, 2, 1, 3))

    q, k, v = hr(q), hr(k), hr(v)
    attn = jnp.einsum("bhmd,bhnd->bhmn", q, k) / math.sqrt(D)
    attn = jax.nn.softmax(attn, axis=-1)
    out = jnp.einsum("bhmn,bhnd->bhmd", attn, v)
    out = jnp.transpose(out, (0, 2, 1, 3)).reshape(B, M, H)
    return out @ params["w_o"].T


if __name__ == "__main__":
    B, M, H, K = 2, 8, 32, 4  # batch, seq, hidden, heads

    key0 = jax.random.PRNGKey(0)
    k_q, k_k, k_v, k_o, k_in1, k_in2, k_in3 = jax.random.split(key0, 7)

    # torch nn.Linear weights have shape (out_features, in_features).
    bound = 1.0 / math.sqrt(H)
    params = {
        "w_q": jax.random.uniform(k_q, (H, H), jnp.float32, -bound, bound),
        "w_k": jax.random.uniform(k_k, (H, H), jnp.float32, -bound, bound),
        "w_v": jax.random.uniform(k_v, (H, H), jnp.float32, -bound, bound),
        "w_o": jax.random.uniform(k_o, (H, H), jnp.float32, -bound, bound),
    }

    query = jax.random.normal(k_in1, (B, M, H), jnp.float32)
    keyx = jax.random.normal(k_in2, (B, M, H), jnp.float32)
    value = jax.random.normal(k_in3, (B, M, H), jnp.float32)

    # Test 1: distinct q/k/v inputs, f32 compute path — tight tolerance so
    # indexing / layout bugs cannot hide behind dtype noise.
    out32 = multi_head_seq_attention(params, query, keyx, value, K,
                                     compute_dtype=jnp.float32)
    out32 = jax.block_until_ready(out32)
    ref = reference(params, query, keyx, value, K)
    assert out32.shape == (B, M, H)
    # 2e-3 covers possible single-pass bf16 MXU rounding of f32 operands while
    # still catching any structural/indexing error (those are O(0.1)+ here).
    assert jnp.allclose(out32, ref, atol=2e-3, rtol=2e-3), float(
        jnp.max(jnp.abs(out32 - ref))
    )

    # Test 2: self-attention (fused QKV path), bf16 compute (production
    # config) — tolerance sized for bf16 operand rounding.
    out_bf = multi_head_seq_attention(params, query, query, query, K,
                                      compute_dtype=jnp.bfloat16)
    out_bf = jax.block_until_ready(out_bf)
    ref_self = reference(params, query, query, query, K)
    assert out_bf.shape == (B, M, H)
    assert jnp.allclose(out_bf, ref_self, atol=5e-2, rtol=5e-2), float(
        jnp.max(jnp.abs(out_bf - ref_self))
    )

    print("KERNEL_OK")
</pallas_src>

<mosaic_0001>
module attributes {stable_mosaic.version = 11 : i64} {
  func.func @_head_proj_kernel(%arg0: i32, %arg1: i32, %arg2: i32, %arg3: memref<1x8x32xf32, #tpu.memory_space<vmem>>, %arg4: memref<1x32x8xf32, #tpu.memory_space<vmem>>, %arg5: memref<1x1x8x8xf32, #tpu.memory_space<vmem>>) attributes {dimension_semantics = [#tpu.dimension_semantics<parallel>, #tpu.dimension_semantics<parallel>, #tpu.dimension_semantics<parallel>], iteration_bounds = array<i64: 2, 1, 4>, scalar_prefetch = 0 : i64, scratch_operands = 0 : i64, tpu.core_type = #tpu.core_type<tc>, window_params = [{transform_indices = @transform_0, window_bounds = array<i64: 1, 8, 32>}, {transform_indices = @transform_1, window_bounds = array<i64: 1, 32, 8>}, {transform_indices = @transform_2, window_bounds = array<i64: 1, 1, 8, 8>}]} {
    %c0 = arith.constant 0 : index
    %c0_0 = arith.constant 0 : index
    %c0_1 = arith.constant 0 : index
    %0 = vector.load %arg3[%c0, %c0_0, %c0_1] : memref<1x8x32xf32, #tpu.memory_space<vmem>>, vector<1x8x32xf32>
    %1 = vector.shape_cast %0 : vector<1x8x32xf32> to vector<8x32xf32>
    %c0_2 = arith.constant 0 : index
    %c0_3 = arith.constant 0 : index
    %c0_4 = arith.constant 0 : index
    %2 = vector.load %arg4[%c0_2, %c0_3, %c0_4] : memref<1x32x8xf32, #tpu.memory_space<vmem>>, vector<1x32x8xf32>
    %3 = vector.shape_cast %2 : vector<1x32x8xf32> to vector<32x8xf32>
    %cst = arith.constant dense<0.000000e+00> : vector<8x8xf32>
    %4 = tpu.matmul %1, %3, %cst {dimension_numbers = #tpu.dot_dimension_numbers<[1], [0], [0], [1], [0, 0, 1, 1], [], []>} : vector<8x32xf32>, vector<32x8xf32>, vector<8x8xf32> -> vector<8x8xf32>
    %c0_5 = arith.constant 0 : index
    %c0_6 = arith.constant 0 : index
    %c0_7 = arith.constant 0 : index
    %c0_8 = arith.constant 0 : index
    %5 = vector.load %arg5[%c0_5, %c0_6, %c0_7, %c0_8] : memref<1x1x8x8xf32, #tpu.memory_space<vmem>>, vector<1x1x8x8xf32>
    %6 = vector.shape_cast %5 : vector<1x1x8x8xf32> to vector<8x8xf32>
    %7 = vector.shape_cast %4 : vector<8x8xf32> to vector<1x1x8x8xf32>
    tpu.vector_store %arg5[%c0_5, %c0_6, %c0_7, %c0_8], %7 {strides = array<i32>} : memref<1x1x8x8xf32, #tpu.memory_space<vmem>>, vector<1x1x8x8xf32>,
    return
  }
  func.func @transform_0(%arg0: i32, %arg1: i32, %arg2: i32) -> (i32, i32, i32) {
    %c0_i32 = arith.constant 0 : i32
    %c0_i32_0 = arith.constant 0 : i32
    return %arg0, %arg1, %c0_i32 : i32, i32, i32
  }
  func.func @transform_1(%arg0: i32, %arg1: i32, %arg2: i32) -> (i32, i32, i32) {
    %c0_i32 = arith.constant 0 : i32
    %c0_i32_0 = arith.constant 0 : i32
    %c0_i32_1 = arith.constant 0 : i32
    return %arg2, %c0_i32, %c0_i32_0 : i32, i32, i32
  }
  func.func @transform_2(%arg0: i32, %arg1: i32, %arg2: i32) -> (i32, i32, i32, i32) {
    %c0_i32 = arith.constant 0 : i32
    %c0_i32_0 = arith.constant 0 : i32
    return %arg0, %arg2, %arg1, %c0_i32 : i32, i32, i32, i32
  }
}

</mosaic_0001>

<llo_original>
// kernel: tpu_custom_call.1
$region0: #{tpu_custom_call.1}
  #allocation0 [shape = 'u32[]', space=smem, size = 0x4, offset = 0x4, fixed_abs, tag = 'smem constant byte address 0x4 - core index']
  #allocation1 [shape = 'u32[144,128]{1,0:T(1,128)}', space=vmem, size = 0x12000, scoped, tag = 'internal scratch']
  %s0 = inlined_call_operand.vmem [shape: f32[2,8,32], index: 0, kind: input, shape index: {}]
  %s1 = inlined_call_operand.vmem [shape: f32[4,32,8], index: 1, kind: input, shape index: {}]
  %s2 = inlined_call_operand.hbm [shape: f32[2,4,8,8], index: 2, kind: output, shape index: {}]
  %s3 = sld [smem:[#allocation0]]
  $region41: #{tpu_custom_call.1} parent=0
    _
  %s5 = ssub.s32 1, %s3
  %s6 = scalar_select 0, %s5, %s3
  $region1: #{tpu_custom_call.1} parent=0
    #allocation2 [shape = 'u8[8192]{0}', space=vmem, size = 0x2000, scoped, tag = 'output window, operand 0']
    #allocation3 [shape = 's32[2]{0}', space=sflag, size = 0x8, scoped, tag = 'scoped memory for tpu_custom_call.1']
    %7 = vsyncpa [#allocation3], 0
    %s8 = scalar_lea.sflag [#allocation3], 1
    %9 = vsyncpa %s8, 0
    loop: start=0, step=1, limit=10
    $region2: #{tpu_custom_call.1} parent=1 // loop_pre_header
      _
    $region3: #{tpu_custom_call.1} parent=1 // loop_header
      %s11 = sphi 0, %s15
      %p12 = scmp.ge.s32.totalorder %s11, 10
      %s18 = sphi 0, %s37
      %s19 = sphi 0, %s33
      %s20 = sphi 0, %s29
      %s21 = sphi 0, %s18
      %s22 = sphi 0, %s19
      %s23 = sphi 0, %s20
      %s24 = sphi 0, %s21
      %s25 = sphi 0, %s22
      %s26 = sphi 0, %s23
      %s42 = sphi 0, %s44
      %s45 = sphi 0, %s42
      %s46 = sphi 0, %s45
      %s62 = sphi 0, %s46
      %s68 = sphi 0, %s70
      %s71 = sphi 0, %s68
      %s72 = sphi 0, %s71
      %s88 = sphi 0, %s72
      %s98 = sphi 0, %s100
      %s101 = sphi 0, %s98
      %s102 = sphi 0, %s101
      %s118 = sphi 0, %s102
    $region4: #{tpu_custom_call.1} parent=1 // loop_header_branch
      %14 = sbr.rel (%p12) target = $region8
    $region5: #{tpu_custom_call.1} parent=1 // loop_body
      %s16 = ssub.s32 %s11, 1
      %s17 = ssub.s32 %s11, 2
      %s27 = sadd.s32 1, %s20
      %p28 = scmp.ge.s32.totalorder %s27, 4
      %s29 = scalar_select %p28, 0, %s27
      %s30 = sadd.s32 1, %s19
      %s31 = scalar_select %p28, %s30, %s19
      %p32 = scmp.ge.s32.totalorder %s31, 1
      %s33 = scalar_select %p32, 0, %s31
      %s34 = sadd.s32 1, %s18
      %s35 = scalar_select %p32, %s34, %s18
      %p36 = scmp.ge.s32.totalorder %s35, 2
      %s37 = scalar_select %p36, 0, %s35
      %s38 = ssub.s32 %s18, %s37
      %s39 = ssub.s32 %s19, %s33
      %s40 = sor.u32 %s38, %s39
      %p41 = scmp.eq.s32.totalorder %s40, 0
      %s43 = sadd.s32 %s42, 1
      %s44 = scalar_select %p41, %s42, %s43
      %p47 = pneg %p41
      %p48 = scmp.eq.s32.totalorder %s11, 7
      %p49 = por %p47, %p48
      %p50 = scmp.ne.s32.totalorder %s42, %s45
      %p51 = scmp.eq.s32.totalorder %s11, 0
      %p52 = por %p50, %p51
      %p53 = scmp.ne.s32.totalorder %s42, %s45
      %p54 = scmp.eq.s32.totalorder %s16, 7
      %p55 = por %p53, %p54
      %p56 = scmp.ne.s32.totalorder %s45, %s46
      %p57 = scmp.eq.s32.totalorder %s16, 0
      %p58 = por %p56, %p57
      %p59 = scmp.ne.s32.totalorder %s45, %s46
      %p60 = scmp.eq.s32.totalorder %s17, 7
      %p61 = por %p59, %p60
      %p63 = scmp.ne.s32.totalorder %s46, %s62
      %p64 = scmp.eq.s32.totalorder %s17, 0
      %p65 = por %p63, %p64
      %s66 = ssub.s32 %s20, %s29
      %p67 = scmp.eq.s32.totalorder %s66, 0
      %s69 = sadd.s32 %s68, 1
      %s70 = scalar_select %p67, %s68, %s69
      %p73 = pneg %p67
      %p74 = scmp.eq.s32.totalorder %s11, 7
      %p75 = por %p73, %p74
      %p76 = scmp.ne.s32.totalorder %s68, %s71
      %p77 = scmp.eq.s32.totalorder %s11, 0
      %p78 = por %p76, %p77
      %p79 = scmp.ne.s32.totalorder %s68, %s71
      %p80 = scmp.eq.s32.totalorder %s16, 7
      %p81 = por %p79, %p80
      %p82 = scmp.ne.s32.totalorder %s71, %s72
      %p83 = scmp.eq.s32.totalorder %s16, 0
      %p84 = por %p82, %p83
      %p85 = scmp.ne.s32.totalorder %s71, %s72
      %p86 = scmp.eq.s32.totalorder %s17, 7
      %p87 = por %p85, %p86
      %p89 = scmp.ne.s32.totalorder %s72, %s88
      %p90 = scmp.eq.s32.totalorder %s17, 0
      %p91 = por %p89, %p90
      %s92 = ssub.s32 %s18, %s37
      %s93 = ssub.s32 %s20, %s29
      %s94 = sor.u32 %s92, %s93
      %s95 = ssub.s32 %s19, %s33
      %s96 = sor.u32 %s94, %s95
      %p97 = scmp.eq.s32.totalorder %s96, 0
      %s99 = sadd.s32 %s98, 1
      %s100 = scalar_select %p97, %s98, %s99
      %p103 = pneg %p97
      %p104 = scmp.eq.s32.totalorder %s11, 7
      %p105 = por %p103, %p104
      %p106 = scmp.ne.s32.totalorder %s98, %s101
      %p107 = scmp.eq.s32.totalorder %s11, 0
      %p108 = por %p106, %p107
      %p109 = scmp.ne.s32.totalorder %s98, %s101
      %p110 = scmp.eq.s32.totalorder %s16, 7
      %p111 = por %p109, %p110
      %p112 = scmp.ne.s32.totalorder %s101, %s102
      %p113 = scmp.eq.s32.totalorder %s16, 0
      %p114 = por %p112, %p113
      %p115 = scmp.ne.s32.totalorder %s101, %s102
      %p116 = scmp.eq.s32.totalorder %s17, 7
      %p117 = por %p115, %p116
      %p119 = scmp.ne.s32.totalorder %s102, %s118
      %p120 = scmp.eq.s32.totalorder %s17, 0
      %p121 = por %p119, %p120
      %p122 = scmp.le.s32.totalorder 1, %s11
      %p123 = scmp.lt.s32.totalorder %s11, 9
      %p124 = pnand %p122, %p123
      %p125 = pneg %p124
      // Predicated region
      $region9: #{tpu_custom_call.1} parent=5 // pred_check
        _
      $region10: #{tpu_custom_call.1} parent=5 // pred_check_branch
        %127 = sbr.rel (%p124) target = $region12
      $region11: #{tpu_custom_call.1} parent=5 // pred_region
        %s128 = ssub.s32 %s11, 1
      $region12: #{tpu_custom_call.1} parent=5 // pred_fallthru
        _
      %p129 = scmp.lt.s32.totalorder %s11, 8
      // Predicated region
      $region13: #{tpu_custom_call.1} parent=5 // pred_check
        %p130 = pneg %p129
      $region14: #{tpu_custom_call.1} parent=5 // pred_check_branch
        %132 = sbr.rel (%p130) target = $region16
      $region15: #{tpu_custom_call.1} parent=5 // pred_region
        // Predicated region
        $region17: #{tpu_custom_call.1} parent=15 // pred_check
          %p133 = pneg %p52
        $region18: #{tpu_custom_call.1} parent=15 // pred_check_branch
          %135 = sbr.rel (%p133) target = $region20
        $region19: #{tpu_custom_call.1} parent=15 // pred_region
          %p136 = scmp.lt.s32.totalorder %s18, 1
          %s137 = scalar_select %p136, %s18, 1
          %p138 = scmp.lt.s32.totalorder %s19, 0
          %s139 = scalar_select %p138, %s19, 0
          %s140 = sadd.s32 %s139, %s137
          %s141 = smul.addr %s140, 8
          %s142 = scalar_lea.vmem %s0, %s141
        $region20: #{tpu_custom_call.1} parent=15 // pred_fallthru
          _
        // Predicated region
        $region21: #{tpu_custom_call.1} parent=15 // pred_check
          %p143 = pneg %p78
        $region22: #{tpu_custom_call.1} parent=15 // pred_check_branch
          %145 = sbr.rel (%p143) target = $region24
        $region23: #{tpu_custom_call.1} parent=15 // pred_region
          %p146 = scmp.lt.s32.totalorder %s20, 3
          %s147 = scalar_select %p146, %s20, 3
          %s148 = smul.addr %s147, 4
          %s149 = smul.addr %s148, 8
          %s150 = scalar_lea.vmem %s1, %s149
        $region24: #{tpu_custom_call.1} parent=15 // pred_fallthru
          _
      $region16: #{tpu_custom_call.1} parent=5 // pred_fallthru
        _
      %p151 = scmp.le.s32.totalorder 1, %s11
      %p152 = scmp.lt.s32.totalorder %s11, 9
      %p153 = pnand %p151, %p152
      %p154 = pneg %p153
      // Predicated region
      $region25: #{tpu_custom_call.1} parent=5 // pred_check
        _
      $region26: #{tpu_custom_call.1} parent=5 // pred_check_branch
        %156 = sbr.rel (%p153) target = $region28
      $region27: #{tpu_custom_call.1} parent=5 // pred_region
        %s157 = ssub.s32 %s11, 1
        %p158 = scmp.lt.s32.totalorder %s21, 1
        %s159 = scalar_select %p158, %s21, 1
        %p160 = scmp.lt.s32.totalorder %s22, 0
        %s161 = scalar_select %p160, %s22, 0
        %s162 = sadd.s32 %s161, %s159
        %s163 = smul.addr %s162, 8
        %s164 = scalar_lea.vmem %s0, %s163
        %p165 = pneg %p58
        %p166 = pneg %p55
        %p167 = scmp.lt.s32.totalorder %s23, 3
        %s168 = scalar_select %p167, %s23, 3
        %s169 = smul.addr %s168, 4
        %s170 = smul.addr %s169, 8
        %s171 = scalar_lea.vmem %s1, %s170
        %p172 = pneg %p84
        %p173 = pneg %p81
        %p174 = pneg %p114
        %p175 = pneg %p111
        %s176 = sand.u32 %s101, 1
        %s177 = scalar_lea.sflag [#allocation3], %s176
        %s178 = sand.u32 %s101, 1
        %s179 = smul.addr %s178, 8
        %s180 = scalar_lea.vmem [#allocation2], %s179
        %p181 = scmp.lt.s32.totalorder %s21, 1
        %s182 = scalar_select %p181, %s21, 1
        %p183 = scmp.lt.s32.totalorder %s22, 0
        %s184 = scalar_select %p183, %s22, 0
        %s185 = sadd.s32 %s184, %s182
        %s186 = smul.addr %s185, 8
        %s187 = scalar_lea.vmem %s0, %s186
        %p188 = scmp.lt.s32.totalorder %s23, 3
        %s189 = scalar_select %p188, %s23, 3
        %s190 = smul.addr %s189, 4
        %s191 = smul.addr %s190, 8
        %s192 = scalar_lea.vmem %s1, %s191
        %v193 = vld [vmem:[%s187] sm:$0xff]
        %v194 = vld [vmem:[%s192] sm:$0xff]
        %v195 = vld [vmem:[%s192 + $0x8] sm:$0xff]
        %v196 = vld [vmem:[%s192 + $0x10] sm:$0xff]
        %v197 = vld [vmem:[%s192 + $0x18] sm:$0xff]
        %vm198 = vcmask 261120
        %v200 = vsel %vm198, %v193, 0
        %202 = vmatprep.subr.mxu0 0.0
        %203 = vmatpush1.msra.mxu0 0.0
        %204 = vmatprep.subr.mxu0 0.0
        %205 = vmatpush1.msra.mxu0 0.0
        %206 = vmatprep.subr.mxu0 0.0
        %207 = vmatpush1.msra.mxu0 0.0
        %208 = vmatprep.subr.mxu0 0.0
        %209 = vmatpush1.msra.mxu0 0.0
        %210 = vmatprep.subr.mxu0 0.0
        %211 = vmatpush1.msra.mxu0 0.0
        %212 = vmatprep.subr.mxu0 0.0
        %213 = vmatpush1.msra.mxu0 0.0
        %214 = vmatprep.subr.mxu0 0.0
        %215 = vmatpush1.msra.mxu0 0.0
        %216 = vmatprep.subr.mxu0 0.0
        %217 = vmatpush1.msra.mxu0 0.0
        %218 = vmatprep.subr.mxu0 0.0
        %219 = vmatpush1.msra.mxu0 0.0
        %220 = vmatprep.subr.mxu0 0.0
        %221 = vmatpush1.msra.mxu0 0.0
        %222 = vmatprep.subr.mxu0 0.0
        %223 = vmatpush1.msra.mxu0 0.0
        %224 = vmatprep.subr.mxu0 0.0
        %225 = vmatpush1.msra.mxu0 0.0
        %226 = vmatprep.subr.mxu0 0.0
        %227 = vmatpush1.msra.mxu0 %v197
        %228 = vmatprep.subr.mxu0 0.0
        %229 = vmatpush1.msra.mxu0 %v196
        %230 = vmatprep.subr.mxu0 0.0
        %231 = vmatpush1.msra.mxu0 %v195
        %232 = vmatprep.subr.mxu0 0.0
        %233 = vmatpush1.msra.mxu0 %v194
        %234 = vmatprep.subr.mxu0 0.0
        %235 = vmatpush2.msra.mxu0 0.0
        %236 = vmatprep.subr.mxu0 0.0
        %237 = vmatpush2.msra.mxu0 0.0
        %238 = vmatprep.subr.mxu0 0.0
        %239 = vmatpush2.msra.mxu0 0.0
        %240 = vmatprep.subr.mxu0 0.0
        %241 = vmatpush2.msra.mxu0 0.0
        %242 = vmatprep.subr.mxu0 0.0
        %243 = vmatpush2.msra.mxu0 0.0
        %244 = vmatprep.subr.mxu0 0.0
        %245 = vmatpush2.msra.mxu0 0.0
        %246 = vmatprep.subr.mxu0 0.0
        %247 = vmatpush2.msra.mxu0 0.0
        %248 = vmatprep.subr.mxu0 0.0
        %249 = vmatpush2.msra.mxu0 0.0
        %250 = vmatprep.subr.mxu0 0.0
        %251 = vmatpush2.msra.mxu0 0.0
        %252 = vmatprep.subr.mxu0 0.0
        %253 = vmatpush2.msra.mxu0 0.0
        %254 = vmatprep.subr.mxu0 0.0
        %255 = vmatpush2.msra.mxu0 0.0
        %256 = vmatprep.subr.mxu0 0.0
        %257 = vmatpush2.msra.mxu0 0.0
        %258 = vmatprep.subr.mxu0 0.0
        %259 = vmatpush2.msra.mxu0 0.0
        %260 = vmatprep.subr.mxu0 0.0
        %261 = vmatpush2.msra.mxu0 0.0
        %262 = vmatprep.subr.mxu0 0.0
        %263 = vmatpush2.msra.mxu0 0.0
        %264 = vmatprep.subr.mxu0 0.0
        %265 = vmatpush2.msra.mxu0 0.0
        %266 = vmatprep.mubr.f32.mxu0 0.0
        %267 = vmatmul.mubr.f32.gmra.mxu0 %v200
        %v268 = vpop.f32.mrf.mxu0
        %v269 = vadd.f32 0.0, %v268
        %v270 = vpop.f32.mrf.mxu0
        %271 = vdwg.mxu0
        %vm272 = vcmask 64512
        %273 = vst.msk [vmem:[%s180] sm:$0xff] %vm272, %v269
        %s274 = sand.u32 %s101, 1
        %s275 = scalar_lea.sflag [#allocation3], %s274
        %s276 = sand.u32 %s101, 1
        %s277 = smul.addr %s276, 8
        %s278 = scalar_lea.vmem [#allocation2], %s277
        // Predicated region
        $region29: #{tpu_custom_call.1} parent=27 // pred_check
          %p279 = pneg %p111
        $region30: #{tpu_custom_call.1} parent=27 // pred_check_branch
          %281 = sbr.rel (%p279) target = $region32
        $region31: #{tpu_custom_call.1} parent=27 // pred_region
          %s283 = ssub.s32 128, 128
          %284 = vsyncadd %s275, %s283
          %s285 = sadd.s32 %s22, %s23
          %s286 = smul.addr %s21, 4
          %s287 = sadd.s32 %s285, %s286
          %s288 = smul.addr %s287, 128
          %s289 = scalar_lea.hbm %s2, %s288
          %s291 = sshll.u32 %s278, 4
          %s292 = int_to_ptr.vmem [resolvable:$true] %s291
          %294 = dma.vmem_to_hbm [thread:$0]  %s292, 128, %s289, %s275
        $region32: #{tpu_custom_call.1} parent=27 // pred_fallthru
          _
      $region28: #{tpu_custom_call.1} parent=5 // pred_fallthru
        _
      %p295 = scmp.le.s32.totalorder 2, %s11
      // Predicated region
      $region33: #{tpu_custom_call.1} parent=5 // pred_check
        %p296 = pneg %p295
      $region34: #{tpu_custom_call.1} parent=5 // pred_check_branch
        %298 = sbr.rel (%p296) target = $region36
      $region35: #{tpu_custom_call.1} parent=5 // pred_region
        %s299 = ssub.s32 %s11, 2
        // Predicated region
        $region37: #{tpu_custom_call.1} parent=35 // pred_check
          %p300 = pneg %p117
        $region38: #{tpu_custom_call.1} parent=35 // pred_check_branch
          %302 = sbr.rel (%p300) target = $region40
        $region39: #{tpu_custom_call.1} parent=35 // pred_region
          %s303 = sand.u32 %s102, 1
          %s304 = scalar_lea.sflag [#allocation3], %s303
          %s305 = sand.u32 %s102, 1
          %s306 = smul.addr %s305, 8
          %s307 = scalar_lea.vmem [#allocation2], %s306
          %308 = dma.done %s304, 128
        $region40: #{tpu_custom_call.1} parent=35 // pred_fallthru
          _
      $region36: #{tpu_custom_call.1} parent=5 // pred_fallthru
        _
    $region6: #{tpu_custom_call.1} parent=1 // loop_footer
      %s15 = sadd.s32 1, %s11
    $region7: #{tpu_custom_call.1} parent=1 // loop_footer_branch
      %10 = sbr.rel target = $region3
    $region8: #{tpu_custom_call.1} parent=1 // loop_exit
      _
    %309 = vsyncpa [#allocation3], 1
    %s310 = scalar_lea.sflag [#allocation3], 1
    %311 = vsyncpa %s310, 1

</llo_original>
